<compile_context>
chip_gen: v7x
topology: tpu7x:2x2x1
jax: 0.10.0
libtpu: 0.0.40
codegen_flags: <defaults>
</compile_context>

<pallas_src>
import functools

import jax
import jax.numpy as jnp
from jax import lax
from jax.experimental import pallas as pl
from jax.experimental.pallas import tpu as pltpu

LANE = 128
MAX_BLOCK_ROWS = 2048   # multiple of 32 so narrow-dtype tiles stay legal


def _cdiv(a, b):
    return -(-a // b)


def _round_up(a, b):
    return _cdiv(a, b) * b


def _num_tensorcores():
    """Best-effort TensorCore count per chip (v7x: 2; v5e/v6e: 1).

    Detection only selects which (equally correct) kernel variant runs.
    """
    try:
        kind = jax.devices()[0].device_kind.lower()
        if "v7" in kind:
            return 2
    except Exception:
        pass
    return 1


def _sigmoid(x):
    # sigmoid(x) == 0.5 * tanh(0.5 * x) + 0.5 : one EUP push per vreg instead
    # of exp + reciprocal (two EUP pushes).
    return 0.5 * jnp.tanh(0.5 * x) + 0.5


def _accumulate(acc_ref, p, t):
    """Accumulate per-(sublane,lane) partials into three (8,128) slabs.

    The (block_rows,128) tile is viewed as (block_rows//8, 8, 128) and summed
    over axis 0: full-vreg VPU adds plus three aligned, unmasked (8,128)
    read-modify-writes.  No cross-sublane XLU reduce, no masked stores.
    """
    g = p.shape[0] // 8
    acc_ref[0:8, :] += (p * t).reshape(g, 8, LANE).sum(axis=0)
    acc_ref[8:16, :] += p.reshape(g, 8, LANE).sum(axis=0)
    acc_ref[16:24, :] += t.reshape(g, 8, LANE).sum(axis=0)


def _dice_single_core_kernel(o_ref, t_ref, out_ref, acc_ref, *,
                             steps, block_rows, tail_valid, smooth):
    """1-D streaming grid; dice formula finalized in-kernel on the last step."""
    i = pl.program_id(0)

    @pl.when(i == 0)
    def _():
        acc_ref[...] = jnp.zeros_like(acc_ref)
        out_ref[...] = jnp.zeros_like(out_ref)

    p = _sigmoid(o_ref[...].astype(jnp.float32))
    t = t_ref[...].astype(jnp.float32)

    if tail_valid == block_rows * LANE:
        # No ragged tail / out-of-bounds rows: unmasked hot path on every step.
        _accumulate(acc_ref, p, t)
    else:
        # Only the last block pays the iota/compare/select mask.
        @pl.when(i < steps - 1)
        def _():
            _accumulate(acc_ref, p, t)

        @pl.when(i == steps - 1)
        def _():
            idx = (lax.broadcasted_iota(jnp.int32, (block_rows, LANE), 0) * LANE
                   + lax.broadcasted_iota(jnp.int32, (block_rows, LANE), 1))
            valid = idx < tail_valid            # block-relative => int32-safe
            _accumulate(acc_ref,
                        jnp.where(valid, p, 0.0),
                        jnp.where(valid, t, 0.0))

    @pl.when(i == steps - 1)
    def _():
        inter = jnp.sum(acc_ref[0:8, :])
        p_sum = jnp.sum(acc_ref[8:16, :])
        t_sum = jnp.sum(acc_ref[16:24, :])
        dice = (2.0 * inter + smooth) / (p_sum + t_sum + smooth)
        out_ref[...] = jnp.full((8, LANE), 1.0 - dice, dtype=jnp.float32)


def _dice_sharded_kernel(o_ref, t_ref, out_ref, *, steps_per_shard,
                         blocks_total, block_rows, tail_valid, mask_needed):
    """2-shard variant for 2-TensorCore chips (v7x); partials per shard."""
    s = pl.program_id(0)
    i = pl.program_id(1)

    @pl.when(i == 0)
    def _():
        out_ref[...] = jnp.zeros_like(out_ref)

    p = _sigmoid(o_ref[...].astype(jnp.float32))
    t = t_ref[...].astype(jnp.float32)

    if not mask_needed:
        _accumulate(out_ref, p, t)
    else:
        g = s * steps_per_shard + i

        @pl.when(g < blocks_total - 1)
        def _():
            _accumulate(out_ref, p, t)

        @pl.when(g >= blocks_total - 1)
        def _():
            # Valid count: ragged-tail size for the real last block, zero for
            # clamped beyond-the-end steps (odd blocks_total).
            vcount = jnp.where(g == blocks_total - 1,
                               jnp.int32(tail_valid), jnp.int32(0))
            idx = (lax.broadcasted_iota(jnp.int32, (block_rows, LANE), 0) * LANE
                   + lax.broadcasted_iota(jnp.int32, (block_rows, LANE), 1))
            valid = idx < vcount
            _accumulate(out_ref,
                        jnp.where(valid, p, 0.0),
                        jnp.where(valid, t, 0.0))


def dice_loss(outputs, targets, smooth=1.0):
    """Pallas TPU implementation of DiceLoss.forward."""
    o_flat = outputs.reshape(-1)
    t_flat = targets.reshape(-1)
    # Stream in native (narrow) dtypes; the cast to f32 happens in VMEM.
    if o_flat.dtype == jnp.bool_:
        o_flat = o_flat.astype(jnp.int8)
    if t_flat.dtype == jnp.bool_:
        t_flat = t_flat.astype(jnp.int8)
    n = o_flat.shape[0]

    rows = _cdiv(n, LANE)
    if rows * LANE != n:
        # Only the <128-element ragged tail is materialized as pad; its values
        # (and any out-of-bounds garbage rows) are masked inside the kernel.
        o_flat = jnp.pad(o_flat, (0, rows * LANE - n))
        t_flat = jnp.pad(t_flat, (0, rows * LANE - n))
    o2d = o_flat.reshape(rows, LANE)
    t2d = t_flat.reshape(rows, LANE)

    # Tile rows: multiple of 8 so the in-kernel (g,8,128) reshape is a pure
    # vreg view; blocks may extend past `rows` (garbage rows are masked).
    block_rows = min(_round_up(rows, 8), MAX_BLOCK_ROWS)
    blocks_total = _cdiv(rows, block_rows)
    tail_valid = n - (blocks_total - 1) * block_rows * LANE  # python int

    num_cores = _num_tensorcores()
    num_shards = 2 if (num_cores >= 2 and blocks_total >= 2) else 1

    cost = pl.CostEstimate(
        flops=8 * n, transcendentals=n,
        bytes_accessed=o2d.size * o2d.dtype.itemsize
        + t2d.size * t2d.dtype.itemsize)

    if num_shards == 1:
        # ---- single-TensorCore path (v5e / v6e) ----------------------------
        steps = blocks_total
        kernel = functools.partial(
            _dice_single_core_kernel, steps=steps, block_rows=block_rows,
            tail_valid=tail_valid, smooth=float(smooth))
        out = pl.pallas_call(
            kernel,
            out_shape=jax.ShapeDtypeStruct((8, LANE), jnp.float32),
            grid_spec=pltpu.PrefetchScalarGridSpec(
                num_scalar_prefetch=0,
                grid=(steps,),
                in_specs=[pl.BlockSpec((block_rows, LANE), lambda i: (i, 0)),
                          pl.BlockSpec((block_rows, LANE), lambda i: (i, 0))],
                out_specs=pl.BlockSpec((8, LANE), lambda i: (0, 0)),
                scratch_shapes=[pltpu.VMEM((24, LANE), jnp.float32)]),
            compiler_params=pltpu.CompilerParams(
                dimension_semantics=(pltpu.ARBITRARY,),
                vmem_limit_bytes=32 * 1024 * 1024),
            cost_estimate=cost,
        )(o2d, t2d)
        return out[0, 0]

    # ---- 2-TensorCore path (v7x): CORE_PARALLEL shard axis -----------------
    steps_per_shard = _cdiv(blocks_total, num_shards)
    mask_needed = (tail_valid != block_rows * LANE
                   or num_shards * steps_per_shard != blocks_total)

    def in_map(s, i):
        # Clamp so beyond-the-end steps re-read the last block; their
        # contribution is zeroed by the in-kernel mask branch.
        return (jnp.minimum(s * steps_per_shard + i, blocks_total - 1), 0)

    def make_in_spec():
        try:   # 3-deep buffering hides DMA issue jitter in v7x's short steps
            return pl.BlockSpec((block_rows, LANE), in_map,
                                pipeline_mode=pl.Buffered(3))
        except Exception:
            return pl.BlockSpec((block_rows, LANE), in_map)

    kernel = functools.partial(
        _dice_sharded_kernel, steps_per_shard=steps_per_shard,
        blocks_total=blocks_total, block_rows=block_rows,
        tail_valid=tail_valid, mask_needed=mask_needed)

    partials = pl.pallas_call(
        kernel,
        out_shape=jax.ShapeDtypeStruct((num_shards * 24, LANE), jnp.float32),
        grid_spec=pltpu.PrefetchScalarGridSpec(
            num_scalar_prefetch=0,
            grid=(num_shards, steps_per_shard),
            in_specs=[make_in_spec(), make_in_spec()],
            out_specs=pl.BlockSpec((24, LANE), lambda s, i: (s, 0)),
        ),
        compiler_params=pltpu.CompilerParams(
            dimension_semantics=(pltpu.CORE_PARALLEL, pltpu.ARBITRARY),
            vmem_limit_bytes=32 * 1024 * 1024),
        cost_estimate=cost,
    )(o2d, t2d)

    # Tiny cross-shard combine + dice formula.
    sums = partials.reshape(num_shards, 3, 8, LANE).sum(axis=(0, 2, 3))
    inter, p_sum, t_sum = sums[0], sums[1], sums[2]
    dice = (2.0 * inter + smooth) / (p_sum + t_sum + smooth)
    return 1.0 - dice


def dice_loss_ref(outputs, targets, smooth=1.0):
    p = jax.nn.sigmoid(outputs.astype(jnp.float32)).reshape(-1)
    t = targets.astype(jnp.float32).reshape(-1)
    inter = jnp.sum(p * t)
    dice = (2.0 * inter + smooth) / (jnp.sum(p) + jnp.sum(t) + smooth)
    return 1.0 - dice


if __name__ == "__main__":
    key = jax.random.PRNGKey(0)
    k1, k2, k3, k4 = jax.random.split(key, 4)

    # NCHW-style logits and binary targets (as the module's forward implies).
    x = jax.random.normal(k1, (2, 4, 16, 16), dtype=jnp.float32)
    y = (jax.random.uniform(k2, (2, 4, 16, 16)) > 0.5).astype(jnp.float32)
    loss = jax.block_until_ready(dice_loss(x, y, smooth=1.0))
    ref = dice_loss_ref(x, y, smooth=1.0)
    assert jnp.allclose(loss, ref, atol=1e-5, rtol=1e-5), (loss, ref)

    # Ragged size (not a multiple of 128) exercises the masked-tail branch.
    x2 = jax.random.normal(k3, (2, 3, 10, 10), dtype=jnp.float32)
    y2 = (jax.random.uniform(k4, (2, 3, 10, 10)) > 0.5).astype(jnp.float32)
    loss2 = jax.block_until_ready(dice_loss(x2, y2, smooth=1.0))
    ref2 = dice_loss_ref(x2, y2, smooth=1.0)
    assert jnp.allclose(loss2, ref2, atol=1e-5, rtol=1e-5), (loss2, ref2)

    # Narrow-dtype streaming path: bf16 logits / bf16 targets (in-kernel cast).
    x3 = jax.random.normal(k1, (2, 4, 16, 16), dtype=jnp.bfloat16)
    y3 = (jax.random.uniform(k2, (2, 4, 16, 16)) > 0.5).astype(jnp.bfloat16)
    loss3 = jax.block_until_ready(dice_loss(x3, y3, smooth=1.0))
    ref3 = dice_loss_ref(x3, y3, smooth=1.0)
    assert jnp.allclose(loss3, ref3, atol=1e-4, rtol=1e-4), (loss3, ref3)

    print("KERNEL_OK")
</pallas_src>

<mosaic_0001>
module attributes {stable_mosaic.version = 11 : i64} {
  func.func @_dice_single_core_kernel(%arg0: i32, %arg1: memref<16x128xf32, #tpu.memory_space<vmem>>, %arg2: memref<16x128xf32, #tpu.memory_space<vmem>>, %arg3: memref<8x128xf32, #tpu.memory_space<vmem>>, %arg4: memref<24x128xf32, #tpu.memory_space<vmem>>) attributes {dimension_semantics = [#tpu.dimension_semantics<arbitrary>], iteration_bounds = array<i64: 1>, scalar_prefetch = 0 : i64, scratch_operands = 1 : i64, tpu.core_type = #tpu.core_type<tc>, window_params = [{transform_indices = @transform_0, window_bounds = array<i64: 16, 128>}, {transform_indices = @transform_1, window_bounds = array<i64: 16, 128>}, {pipeline_mode = #tpu.pipeline_mode<synchronous>, transform_indices = @transform_2, window_bounds = array<i64: 8, 128>}]} {
    %c0_i32 = arith.constant 0 : i32
    %0 = arith.cmpi eq, %arg0, %c0_i32 : i32
    %1 = arith.extui %0 : i1 to i32
    %c0_i32_0 = arith.constant 0 : i32
    %2 = arith.cmpi ne, %1, %c0_i32_0 : i32
    scf.if %2 {
      %cst_21 = arith.constant 0.000000e+00 : f32
      %31 = vector.broadcast %cst_21 : f32 to vector<24x128xf32>
      %c0_22 = arith.constant 0 : index
      %c0_23 = arith.constant 0 : index
      %32 = vector.load %arg4[%c0_22, %c0_23] : memref<24x128xf32, #tpu.memory_space<vmem>>, vector<24x128xf32>
      tpu.vector_store %arg4[%c0_22, %c0_23], %31 {strides = array<i32>} : memref<24x128xf32, #tpu.memory_space<vmem>>, vector<24x128xf32>,
      %cst_24 = arith.constant 0.000000e+00 : f32
      %33 = vector.broadcast %cst_24 : f32 to vector<8x128xf32>
      %c0_25 = arith.constant 0 : index
      %c0_26 = arith.constant 0 : index
      %34 = vector.load %arg3[%c0_25, %c0_26] : memref<8x128xf32, #tpu.memory_space<vmem>>, vector<8x128xf32>
      tpu.vector_store %arg3[%c0_25, %c0_26], %33 {strides = array<i32>} : memref<8x128xf32, #tpu.memory_space<vmem>>, vector<8x128xf32>,
    } else {
    }
    %c0 = arith.constant 0 : index
    %c0_1 = arith.constant 0 : index
    %3 = vector.load %arg1[%c0, %c0_1] : memref<16x128xf32, #tpu.memory_space<vmem>>, vector<16x128xf32>
    %cst = arith.constant 5.000000e-01 : f32
    %4 = vector.broadcast %cst : f32 to vector<16x128xf32>
    %5 = arith.mulf %4, %3 : vector<16x128xf32>
    %6 = math.tanh %5 : vector<16x128xf32>
    %cst_2 = arith.constant 5.000000e-01 : f32
    %7 = vector.broadcast %cst_2 : f32 to vector<16x128xf32>
    %8 = arith.mulf %7, %6 : vector<16x128xf32>
    %cst_3 = arith.constant 5.000000e-01 : f32
    %9 = vector.broadcast %cst_3 : f32 to vector<16x128xf32>
    %10 = arith.addf %8, %9 : vector<16x128xf32>
    %c0_4 = arith.constant 0 : index
    %c0_5 = arith.constant 0 : index
    %11 = vector.load %arg2[%c0_4, %c0_5] : memref<16x128xf32, #tpu.memory_space<vmem>>, vector<16x128xf32>
    %c0_6 = arith.constant 0 : index
    %c0_7 = arith.constant 0 : index
    %12 = vector.load %arg4[%c0_6, %c0_7] : memref<24x128xf32, #tpu.memory_space<vmem>>, vector<8x128xf32>
    %13 = arith.mulf %10, %11 : vector<16x128xf32>
    %14 = vector.shape_cast %13 : vector<16x128xf32> to vector<2x8x128xf32>
    %cst_8 = arith.constant dense<0.000000e+00> : vector<8x128xf32>
    %15 = vector.multi_reduction <add>, %14, %cst_8 [0] : vector<2x8x128xf32> to vector<8x128xf32>
    %16 = arith.addf %12, %15 : vector<8x128xf32>
    %c0_9 = arith.constant 0 : index
    %c0_10 = arith.constant 0 : index
    %17 = vector.load %arg4[%c0_9, %c0_10] : memref<24x128xf32, #tpu.memory_space<vmem>>, vector<8x128xf32>
    tpu.vector_store %arg4[%c0_9, %c0_10], %16 {strides = array<i32>} : memref<24x128xf32, #tpu.memory_space<vmem>>, vector<8x128xf32>,
    %c8 = arith.constant 8 : index
    %c0_11 = arith.constant 0 : index
    %18 = vector.load %arg4[%c8, %c0_11] : memref<24x128xf32, #tpu.memory_space<vmem>>, vector<8x128xf32>
    %19 = vector.shape_cast %10 : vector<16x128xf32> to vector<2x8x128xf32>
    %cst_12 = arith.constant dense<0.000000e+00> : vector<8x128xf32>
    %20 = vector.multi_reduction <add>, %19, %cst_12 [0] : vector<2x8x128xf32> to vector<8x128xf32>
    %21 = arith.addf %18, %20 : vector<8x128xf32>
    %c8_13 = arith.constant 8 : index
    %c0_14 = arith.constant 0 : index
    %22 = vector.load %arg4[%c8_13, %c0_14] : memref<24x128xf32, #tpu.memory_space<vmem>>, vector<8x128xf32>
    tpu.vector_store %arg4[%c8_13, %c0_14], %21 {strides = array<i32>} : memref<24x128xf32, #tpu.memory_space<vmem>>, vector<8x128xf32>,
    %c16 = arith.constant 16 : index
    %c0_15 = arith.constant 0 : index
    %23 = vector.load %arg4[%c16, %c0_15] : memref<24x128xf32, #tpu.memory_space<vmem>>, vector<8x128xf32>
    %24 = vector.shape_cast %11 : vector<16x128xf32> to vector<2x8x128xf32>
    %cst_16 = arith.constant dense<0.000000e+00> : vector<8x128xf32>
    %25 = vector.multi_reduction <add>, %24, %cst_16 [0] : vector<2x8x128xf32> to vector<8x128xf32>
    %26 = arith.addf %23, %25 : vector<8x128xf32>
    %c16_17 = arith.constant 16 : index
    %c0_18 = arith.constant 0 : index
    %27 = vector.load %arg4[%c16_17, %c0_18] : memref<24x128xf32, #tpu.memory_space<vmem>>, vector<8x128xf32>
    tpu.vector_store %arg4[%c16_17, %c0_18], %26 {strides = array<i32>} : memref<24x128xf32, #tpu.memory_space<vmem>>, vector<8x128xf32>,
    %c0_i32_19 = arith.constant 0 : i32
    %28 = arith.cmpi eq, %arg0, %c0_i32_19 : i32
    %29 = arith.extui %28 : i1 to i32
    %c0_i32_20 = arith.constant 0 : i32
    %30 = arith.cmpi ne, %29, %c0_i32_20 : i32
    scf.if %30 {
      %c0_21 = arith.constant 0 : index
      %c0_22 = arith.constant 0 : index
      %31 = vector.load %arg4[%c0_21, %c0_22] : memref<24x128xf32, #tpu.memory_space<vmem>>, vector<8x128xf32>
      %32 = vector.shape_cast %31 : vector<8x128xf32> to vector<1x8x128xf32>
      %cst_23 = arith.constant dense<0.000000e+00> : vector<1xf32>
      %33 = vector.multi_reduction <add>, %32, %cst_23 [1, 2] : vector<1x8x128xf32> to vector<1xf32>
      %34 = vector.shape_cast %33 : vector<1xf32> to vector<1x1x1xf32>
      %35 = vector.extract %34[0, 0, 0] : f32 from vector<1x1x1xf32>
      %c8_24 = arith.constant 8 : index
      %c0_25 = arith.constant 0 : index
      %36 = vector.load %arg4[%c8_24, %c0_25] : memref<24x128xf32, #tpu.memory_space<vmem>>, vector<8x128xf32>
      %37 = vector.shape_cast %36 : vector<8x128xf32> to vector<1x8x128xf32>
      %cst_26 = arith.constant dense<0.000000e+00> : vector<1xf32>
      %38 = vector.multi_reduction <add>, %37, %cst_26 [1, 2] : vector<1x8x128xf32> to vector<1xf32>
      %39 = vector.shape_cast %38 : vector<1xf32> to vector<1x1x1xf32>
      %40 = vector.extract %39[0, 0, 0] : f32 from vector<1x1x1xf32>
      %c16_27 = arith.constant 16 : index
      %c0_28 = arith.constant 0 : index
      %41 = vector.load %arg4[%c16_27, %c0_28] : memref<24x128xf32, #tpu.memory_space<vmem>>, vector<8x128xf32>
      %42 = vector.shape_cast %41 : vector<8x128xf32> to vector<1x8x128xf32>
      %cst_29 = arith.constant dense<0.000000e+00> : vector<1xf32>
      %43 = vector.multi_reduction <add>, %42, %cst_29 [1, 2] : vector<1x8x128xf32> to vector<1xf32>
      %44 = vector.shape_cast %43 : vector<1xf32> to vector<1x1x1xf32>
      %45 = vector.extract %44[0, 0, 0] : f32 from vector<1x1x1xf32>
      %cst_30 = arith.constant 2.000000e+00 : f32
      %46 = arith.mulf %cst_30, %35 : f32
      %cst_31 = arith.constant 1.000000e+00 : f32
      %47 = arith.addf %46, %cst_31 : f32
      %48 = arith.addf %40, %45 : f32
      %cst_32 = arith.constant 1.000000e+00 : f32
      %49 = arith.addf %48, %cst_32 : f32
      %50 = arith.divf %47, %49 : f32
      %cst_33 = arith.constant 1.000000e+00 : f32
      %51 = arith.subf %cst_33, %50 : f32
      %52 = vector.broadcast %51 : f32 to vector<8x128xf32>
      %c0_34 = arith.constant 0 : index
      %c0_35 = arith.constant 0 : index
      %53 = vector.load %arg3[%c0_34, %c0_35] : memref<8x128xf32, #tpu.memory_space<vmem>>, vector<8x128xf32>
      tpu.vector_store %arg3[%c0_34, %c0_35], %52 {strides = array<i32>} : memref<8x128xf32, #tpu.memory_space<vmem>>, vector<8x128xf32>,
    } else {
    }
    return
  }
  func.func @transform_0(%arg0: i32) -> (i32, i32) {
    %c0_i32 = arith.constant 0 : i32
    %c0_i32_0 = arith.constant 0 : i32
    return %arg0, %c0_i32 : i32, i32
  }
  func.func @transform_1(%arg0: i32) -> (i32, i32) {
    %c0_i32 = arith.constant 0 : i32
    %c0_i32_0 = arith.constant 0 : i32
    return %arg0, %c0_i32 : i32, i32
  }
  func.func @transform_2(%arg0: i32) -> (i32, i32) {
    %c0_i32 = arith.constant 0 : i32
    %c0_i32_0 = arith.constant 0 : i32
    %c0_i32_1 = arith.constant 0 : i32
    return %c0_i32, %c0_i32_0 : i32, i32
  }
}

</mosaic_0001>

<llo_original>
// kernel: tpu_custom_call.1
$region0: #{tpu_custom_call.1}
  #allocation0 [shape = 'u32[]', space=smem, size = 0x4, offset = 0x4, fixed_abs, tag = 'smem constant byte address 0x4 - core index']
  #allocation1 [shape = 'u32[144,128]{1,0:T(1,128)}', space=vmem, size = 0x12000, scoped, tag = 'internal scratch']
  #allocation2 [shape = 'f32[24,128]{1,0:T(8,128)}', space=vmem, size = 0x3000, scoped, tag = 'scratch operand']
  %s0 = inlined_call_operand.hbm [shape: f32[16,128], index: 0, kind: input, shape index: {}]
  %s1 = inlined_call_operand.hbm [shape: f32[16,128], index: 1, kind: input, shape index: {}]
  %s2 = inlined_call_operand.hbm [shape: f32[8,128], index: 2, kind: output, shape index: {}]
  %s3 = sld [smem:[#allocation0]]
  $region34: #{tpu_custom_call.1} parent=0
    _
  %s5 = ssub.s32 1, %s3
  %s6 = scalar_select 0, %s5, %s3
  $region1: #{tpu_custom_call.1} parent=0
    #allocation3 [shape = 'u8[8192]{0}', space=vmem, size = 0x2000, scoped, tag = 'input window, operand 0, single buffered']
    #allocation4 [shape = 's32[1]{0}', space=sflag, size = 0x4, scoped, tag = 'scoped memory for tpu_custom_call.1']
    #allocation5 [shape = 's32[1]{0}', space=sflag, size = 0x4, scoped, tag = 'scoped memory for tpu_custom_call.1']
    #allocation6 [shape = 'u8[8192]{0}', space=vmem, size = 0x2000, scoped, tag = 'input window, operand 1, single buffered']
    #allocation7 [shape = 's32[1]{0}', space=sflag, size = 0x4, scoped, tag = 'scoped memory for tpu_custom_call.1']
    #allocation8 [shape = 'u8[4096]{0}', space=vmem, size = 0x1000, scoped, tag = 'output window, operand 0, single buffered']
    %7 = vsyncpa [#allocation4], 0
    %8 = vsyncpa [#allocation7], 0
    %9 = vsyncpa [#allocation5], 0
    // Predicated region
    $region2: #{tpu_custom_call.1} parent=1 // pred_check
      _
    $region3: #{tpu_custom_call.1} parent=1 // pred_check_branch
      %11 = sbr.rel (0) target = $region5
    $region4: #{tpu_custom_call.1} parent=1 // pred_region
      %s13 = ssub.s32 256, 256
      %14 = vsyncadd [#allocation4], %s13
      %s15 = sshll.u32 [#allocation3], 4
      %s16 = int_to_ptr.vmem [resolvable:$true] %s15
      %21 = dma.hbm_to_vmem [thread:$0]  %s0, 256, %s16, [#allocation4], 128, 128, 8
    $region5: #{tpu_custom_call.1} parent=1 // pred_fallthru
      _
    // Predicated region
    $region6: #{tpu_custom_call.1} parent=1 // pred_check
      _
    $region7: #{tpu_custom_call.1} parent=1 // pred_check_branch
      %23 = sbr.rel (0) target = $region9
    $region8: #{tpu_custom_call.1} parent=1 // pred_region
      %s25 = ssub.s32 256, 256
      %26 = vsyncadd [#allocation7], %s25
      %s27 = sshll.u32 [#allocation6], 4
      %s28 = int_to_ptr.vmem [resolvable:$true] %s27
      %33 = dma.hbm_to_vmem [thread:$0]  %s1, 256, %s28, [#allocation7], 128, 128, 8
    $region9: #{tpu_custom_call.1} parent=1 // pred_fallthru
      _
    // Predicated region
    $region10: #{tpu_custom_call.1} parent=1 // pred_check
      _
    $region11: #{tpu_custom_call.1} parent=1 // pred_check_branch
      %35 = sbr.rel (0) target = $region13
    $region12: #{tpu_custom_call.1} parent=1 // pred_region
      %36 = dma.done [#allocation4], 256
    $region13: #{tpu_custom_call.1} parent=1 // pred_fallthru
      _
    // Predicated region
    $region14: #{tpu_custom_call.1} parent=1 // pred_check
      _
    $region15: #{tpu_custom_call.1} parent=1 // pred_check_branch
      %38 = sbr.rel (0) target = $region17
    $region16: #{tpu_custom_call.1} parent=1 // pred_region
      %39 = dma.done [#allocation7], 256
    $region17: #{tpu_custom_call.1} parent=1 // pred_fallthru
      _
    %p40 = scmp.eq.s32.totalorder 0, 0
    // Predicated region
    $region18: #{tpu_custom_call.1} parent=1 // pred_check
      %p41 = pneg %p40
    $region19: #{tpu_custom_call.1} parent=1 // pred_check_branch
      %43 = sbr.rel (%p41) target = $region21
    $region20: #{tpu_custom_call.1} parent=1 // pred_region
      %44 = vst [vmem:[#allocation2] sm:$0xff] 0.0
      %45 = vst [vmem:[#allocation2 + $0x8] sm:$0xff] 0.0
      %46 = vst [vmem:[#allocation2 + $0x10] sm:$0xff] 0.0
      %47 = vst [vmem:[#allocation8] sm:$0xff] 0.0
    $region21: #{tpu_custom_call.1} parent=1 // pred_fallthru
      _
    %v48 = vld [vmem:[#allocation3] sm:$0xff]
    %v49 = vld [vmem:[#allocation3 + $0x8] sm:$0xff]
    %v50 = vmul.f32 %v48, 0.5
    %v51 = vmul.f32 %v49, 0.5
    %v52 = vtanh.pop %v50
    %v53 = vtanh.pop %v51
    %v54 = vmul.f32 %v52, 0.5
    %v55 = vmul.f32 %v53, 0.5
    %v56 = vadd.f32 %v54, 0.5
    %v57 = vadd.f32 %v55, 0.5
    %v58 = vld [vmem:[#allocation6] sm:$0xff]
    %v59 = vld [vmem:[#allocation6 + $0x8] sm:$0xff]
    %v60 = vld [vmem:[#allocation2] sm:$0xff]
    %v61 = vmul.f32 %v56, %v58
    %v62 = vmul.f32 %v57, %v59
    %v63 = vadd.f32 %v61, %v62
    %v64 = vadd.f32 %v60, %v63
    %65 = vst [vmem:[#allocation2] sm:$0xff] %v64
    %v66 = vld [vmem:[#allocation2 + $0x8] sm:$0xff]
    %v67 = vadd.f32 %v56, %v57
    %v68 = vadd.f32 %v66, %v67
    %69 = vst [vmem:[#allocation2 + $0x8] sm:$0xff] %v68
    %v70 = vld [vmem:[#allocation2 + $0x10] sm:$0xff]
    %v71 = vadd.f32 %v58, %v59
    %v72 = vadd.f32 %v70, %v71
    %73 = vst [vmem:[#allocation2 + $0x10] sm:$0xff] %v72
    // Predicated region
    $region22: #{tpu_custom_call.1} parent=1 // pred_check
      %p74 = pneg %p40
    $region23: #{tpu_custom_call.1} parent=1 // pred_check_branch
      %76 = sbr.rel (%p74) target = $region25
    $region24: #{tpu_custom_call.1} parent=1 // pred_region
      %v77 = vld [vmem:[#allocation2] sm:$0xff]
      %78 = vadd.xlane.f32.xlu0 %v77
      %v79 = vpop.xlane.xlu0 %78
      %v80 = vrot.slane %v79, 4
      %v81 = vadd.f32 %v79, %v80
      %v82 = vrot.slane %v81, 2
      %v83 = vadd.f32 %v81, %v82
      %v84 = vrot.slane %v83, 1
      %v85 = vadd.f32 %v83, %v84
      %s86 = vtos %v85
      %v87 = vld [vmem:[#allocation2 + $0x8] sm:$0xff]
      %88 = vadd.xlane.f32.xlu0 %v87
      %v89 = vpop.xlane.xlu0 %88
      %v90 = vrot.slane %v89, 4
      %v91 = vadd.f32 %v89, %v90
      %v92 = vrot.slane %v91, 2
      %v93 = vadd.f32 %v91, %v92
      %v94 = vrot.slane %v93, 1
      %v95 = vadd.f32 %v93, %v94
      %s96 = vtos %v95
      %v97 = vld [vmem:[#allocation2 + $0x10] sm:$0xff]
      %98 = vadd.xlane.f32.xlu0 %v97
      %v99 = vpop.xlane.xlu0 %98
      %v100 = vrot.slane %v99, 4
      %v101 = vadd.f32 %v99, %v100
      %v102 = vrot.slane %v101, 2
      %v103 = vadd.f32 %v101, %v102
      %v104 = vrot.slane %v103, 1
      %v105 = vadd.f32 %v103, %v104
      %s106 = vtos %v105
      %s107 = smul.f32 %s86, 2.0
      %s108 = sadd.f32 %s107, 1.0
      %s109 = sadd.f32 %s96, %s106
      %s110 = sadd.f32 %s109, 1.0
      %v111 = vstv %s110
      %v112 = vrcp.pop %v111
      %s113 = vtos %v112
      %s114 = smul.f32 %s108, %s113
      %s115 = ssub.f32 1.0, %s114
      %v116 = vstv %s115
      %117 = vst [vmem:[#allocation8] sm:$0xff] %v116
    $region25: #{tpu_custom_call.1} parent=1 // pred_fallthru
      _
    // Predicated region
    $region26: #{tpu_custom_call.1} parent=1 // pred_check
      _
    $region27: #{tpu_custom_call.1} parent=1 // pred_check_branch
      %119 = sbr.rel (0) target = $region29
    $region28: #{tpu_custom_call.1} parent=1 // pred_region
      %s121 = ssub.s32 128, 128
      %122 = vsyncadd [#allocation5], %s121
      %s124 = sshll.u32 [#allocation8], 4
      %s125 = int_to_ptr.vmem [resolvable:$true] %s124
      %127 = dma.vmem_to_hbm [thread:$0]  %s125, 128, %s2, [#allocation5]
    $region29: #{tpu_custom_call.1} parent=1 // pred_fallthru
      _
    // Predicated region
    $region30: #{tpu_custom_call.1} parent=1 // pred_check
      _
    $region31: #{tpu_custom_call.1} parent=1 // pred_check_branch
      %129 = sbr.rel (0) target = $region33
    $region32: #{tpu_custom_call.1} parent=1 // pred_region
      %130 = dma.done [#allocation5], 128
    $region33: #{tpu_custom_call.1} parent=1 // pred_fallthru
      _
    %131 = vsyncpa [#allocation4], 1
    %132 = vsyncpa [#allocation7], 1
    %133 = vsyncpa [#allocation5], 1

</llo_original>
